<compile_context>
chip_gen: v6e
topology: v6e:2x2x1
jax: 0.10.0
libtpu: 0.0.40
codegen_flags: <defaults>
</compile_context>

<pallas_src>
import jax
import jax.numpy as jnp
from jax.experimental import pallas as pl
from jax.experimental.pallas import tpu as pltpu

_SUBLANE = 8


def _round_up(x, m):
    return ((x + m - 1) // m) * m


def _senet_kernel(x_ref, w1t_ref, w2t_ref, o_ref):
    # x_ref:   (tm, C)  row tile of the flattened input (model dtype)
    # w1t_ref: (C, H)   squeeze weight, transposed, fully resident in VMEM
    # w2t_ref: (H, C)   excitation weight, transposed, fully resident in VMEM
    x = x_ref[...]

    # squeeze + ReLU (MXU, f32 accumulation)
    h = jnp.dot(x.astype(w1t_ref.dtype), w1t_ref[...],
                preferred_element_type=jnp.float32)
    h = jnp.maximum(h, 0.0)

    # excitation + sigmoid (MXU in the weight dtype, f32 accumulation; sigmoid on EUP)
    g = jnp.dot(h.astype(w2t_ref.dtype), w2t_ref[...],
                preferred_element_type=jnp.float32)
    g = jax.nn.sigmoid(g)

    # gate the input in the model dtype (no f32 upcast of the x tile)
    o_ref[...] = x * g.astype(o_ref.dtype)


def _vmem_capacity_bytes():
    """Physical per-core VMEM, with a conservative fallback (v7x per-TC)."""
    try:
        info = pltpu.get_tpu_info()
        cap = getattr(info, "vmem_capacity_bytes", None)
        if cap:
            return int(cap)
    except Exception:
        pass
    return 64 * 1024 * 1024


def senet_forward(x, w1, w2, *, mxu_dtype=None):
    """x: (..., C); w1: (C//r, C); w2: (C, C//r). Returns array shaped like x.

    mxu_dtype: optionally cast MXU operands (e.g. jnp.bfloat16 on v5e for f32
    models, accuracy permitting) while keeping f32 accumulation. None = exact.
    """
    orig_shape = x.shape
    C = x.shape[-1]
    H = w1.shape[0]
    xf = x.reshape(-1, C)
    N = xf.shape[0]

    w1t = jnp.transpose(w1)  # (C, H)
    w2t = jnp.transpose(w2)  # (H, C)
    if mxu_dtype is not None:
        w1t = w1t.astype(mxu_dtype)
        w2t = w2t.astype(mxu_dtype)

    x_item = jnp.dtype(x.dtype).itemsize
    w_item = jnp.dtype(w1t.dtype).itemsize

    # ---- generation-aware VMEM budgeting --------------------------------
    phys_vmem = _vmem_capacity_bytes()
    usable = (phys_vmem * 3) // 4           # ~96 MiB on v5e/v6e, ~48 MiB on v7x

    weights_bytes = 2 * C * H * w_item      # one resident copy of each weight
    # Per-row footprint: double-buffered input + output tiles (model dtype),
    # f32 intermediates (g, h) + the h cast, plus slack for the loaded x vregs.
    per_row = 5 * C * x_item + 4 * C + (4 + w_item) * H
    margin = 2 * 1024 * 1024
    streaming = max(per_row * _SUBLANE, usable - weights_bytes - margin)

    tm = streaming // per_row
    tm = max(_SUBLANE, (tm // _SUBLANE) * _SUBLANE)
    # Keep >= 2 row tiles so the "parallel" axis can shard across v7x's two
    # TensorCores (one harmless extra grid step on single-TC generations).
    if N > _SUBLANE:
        tm = min(tm, _round_up(pl.cdiv(N, 2), _SUBLANE))
    tm = min(tm, _round_up(N, _SUBLANE))
    if N <= _SUBLANE:
        tm = N                               # block dim == full array dim

    num_tiles = pl.cdiv(N, tm)

    cost = pl.CostEstimate(
        flops=4 * N * C * H + N * C + N * H,
        transcendentals=N * C,                               # sigmoid
        bytes_accessed=2 * N * C * x_item + 2 * C * H * w_item,
    )

    out = pl.pallas_call(
        _senet_kernel,
        out_shape=jax.ShapeDtypeStruct((N, C), x.dtype),
        grid_spec=pl.GridSpec(
            grid=(num_tiles,),
            in_specs=[
                pl.BlockSpec((tm, C), lambda i: (i, 0)),
                # whole weights resident in VMEM, single copy, no pipelining
                pl.BlockSpec(memory_space=pltpu.MemorySpace.VMEM),
                pl.BlockSpec(memory_space=pltpu.MemorySpace.VMEM),
            ],
            out_specs=pl.BlockSpec((tm, C), lambda i: (i, 0)),
        ),
        compiler_params=pltpu.CompilerParams(
            dimension_semantics=("parallel",),   # shards rows across v7x TCs
            vmem_limit_bytes=int(usable),
        ),
        cost_estimate=cost,
    )(xf, w1t, w2t)

    return out.reshape(orig_shape)


if __name__ == "__main__":
    # Small shapes consistent with the module: batch=2, seq=8, channels=32, ratio=8
    B, S, C, ratio = 2, 8, 32, 8
    H = C // ratio

    key = jax.random.PRNGKey(0)
    kx, k1, k2 = jax.random.split(key, 3)

    x = jax.random.normal(kx, (B, S, C), dtype=jnp.float32)
    # PyTorch Linear convention: weight shape is (out_features, in_features)
    w1 = jax.random.normal(k1, (H, C), dtype=jnp.float32) * 0.1  # squeeze
    w2 = jax.random.normal(k2, (C, H), dtype=jnp.float32) * 0.1  # excitation

    out = senet_forward(x, w1, w2)
    out = jax.block_until_ready(out)

    # Pure-JAX reference check
    h_ref = jnp.maximum(jnp.einsum("bsc,hc->bsh", x, w1), 0.0)
    g_ref = jax.nn.sigmoid(jnp.einsum("bsh,ch->bsc", h_ref, w2))
    ref = x * g_ref
    assert out.shape == x.shape
    assert jnp.allclose(out, ref, atol=1e-5, rtol=1e-5)

    print("KERNEL_OK")
</pallas_src>

<mosaic_0001>
module attributes {stable_mosaic.version = 11 : i64} {
  func.func @_senet_kernel(%arg0: i32, %arg1: memref<8x32xf32, #tpu.memory_space<vmem>>, %arg2: memref<32x4xf32, #tpu.memory_space<vmem>>, %arg3: memref<4x32xf32, #tpu.memory_space<vmem>>, %arg4: memref<8x32xf32, #tpu.memory_space<vmem>>) attributes {dimension_semantics = [#tpu.dimension_semantics<parallel>], iteration_bounds = array<i64: 2>, scalar_prefetch = 0 : i64, scratch_operands = 0 : i64, tpu.core_type = #tpu.core_type<tc>, window_params = [{transform_indices = @transform_0, window_bounds = array<i64: 8, 32>}, {pipeline_mode = #tpu.pipeline_mode<synchronous>, transform_indices = @transform_1, window_bounds = array<i64: 32, 4>}, {pipeline_mode = #tpu.pipeline_mode<synchronous>, transform_indices = @transform_2, window_bounds = array<i64: 4, 32>}, {transform_indices = @transform_3, window_bounds = array<i64: 8, 32>}]} {
    %c0 = arith.constant 0 : index
    %c0_0 = arith.constant 0 : index
    %0 = vector.load %arg1[%c0, %c0_0] : memref<8x32xf32, #tpu.memory_space<vmem>>, vector<8x32xf32>
    %c0_1 = arith.constant 0 : index
    %c0_2 = arith.constant 0 : index
    %1 = vector.load %arg2[%c0_1, %c0_2] : memref<32x4xf32, #tpu.memory_space<vmem>>, vector<32x4xf32>
    %cst = arith.constant dense<0.000000e+00> : vector<8x4xf32>
    %2 = tpu.matmul %0, %1, %cst {dimension_numbers = #tpu.dot_dimension_numbers<[1], [0], [0], [1], [0, 0, 1, 1], [], []>} : vector<8x32xf32>, vector<32x4xf32>, vector<8x4xf32> -> vector<8x4xf32>
    %cst_3 = arith.constant 0.000000e+00 : f32
    %3 = vector.broadcast %cst_3 : f32 to vector<8x4xf32>
    %4 = arith.maximumf %2, %3 : vector<8x4xf32>
    %c0_4 = arith.constant 0 : index
    %c0_5 = arith.constant 0 : index
    %5 = vector.load %arg3[%c0_4, %c0_5] : memref<4x32xf32, #tpu.memory_space<vmem>>, vector<4x32xf32>
    %cst_6 = arith.constant dense<0.000000e+00> : vector<8x32xf32>
    %6 = tpu.matmul %4, %5, %cst_6 {dimension_numbers = #tpu.dot_dimension_numbers<[1], [0], [0], [1], [0, 0, 1, 1], [], []>} : vector<8x4xf32>, vector<4x32xf32>, vector<8x32xf32> -> vector<8x32xf32>
    %7 = arith.negf %6 : vector<8x32xf32>
    %8 = math.exp %7 : vector<8x32xf32>
    %cst_7 = arith.constant 1.000000e+00 : f32
    %9 = vector.broadcast %cst_7 : f32 to vector<8x32xf32>
    %10 = arith.addf %9, %8 : vector<8x32xf32>
    %11 = arith.divf %9, %10 : vector<8x32xf32>
    %12 = arith.mulf %0, %11 : vector<8x32xf32>
    %c0_8 = arith.constant 0 : index
    %c0_9 = arith.constant 0 : index
    %13 = vector.load %arg4[%c0_8, %c0_9] : memref<8x32xf32, #tpu.memory_space<vmem>>, vector<8x32xf32>
    tpu.vector_store %arg4[%c0_8, %c0_9], %12 {strides = array<i32>} : memref<8x32xf32, #tpu.memory_space<vmem>>, vector<8x32xf32>,
    return
  }
  func.func @transform_0(%arg0: i32) -> (i32, i32) {
    %c0_i32 = arith.constant 0 : i32
    %c0_i32_0 = arith.constant 0 : i32
    return %arg0, %c0_i32 : i32, i32
  }
  func.func @transform_1(%arg0: i32) -> (i32, i32) {
    %c0_i32 = arith.constant 0 : i32
    %c0_i32_0 = arith.constant 0 : i32
    %c0_i32_1 = arith.constant 0 : i32
    return %c0_i32, %c0_i32_0 : i32, i32
  }
  func.func @transform_2(%arg0: i32) -> (i32, i32) {
    %c0_i32 = arith.constant 0 : i32
    %c0_i32_0 = arith.constant 0 : i32
    %c0_i32_1 = arith.constant 0 : i32
    return %c0_i32, %c0_i32_0 : i32, i32
  }
  func.func @transform_3(%arg0: i32) -> (i32, i32) {
    %c0_i32 = arith.constant 0 : i32
    %c0_i32_0 = arith.constant 0 : i32
    return %arg0, %c0_i32 : i32, i32
  }
}

</mosaic_0001>

<llo_original>
// kernel: tpu_custom_call.1
$region0: #{tpu_custom_call.1}
  #allocation0 [shape = 'u32[]', space=smem, size = 0x4, offset = 0x4, fixed_abs, tag = 'smem constant byte address 0x4 - core index']
  #allocation1 [shape = 'u32[144,128]{1,0:T(1,128)}', space=vmem, size = 0x12000, scoped, tag = 'internal scratch']
  %s0 = inlined_call_operand.vmem [shape: f32[16,32], index: 0, kind: input, shape index: {}]
  %s1 = inlined_call_operand.vmem [shape: f32[32,4], index: 1, kind: input, shape index: {}]
  %s2 = inlined_call_operand.vmem [shape: f32[4,32], index: 2, kind: input, shape index: {}]
  %s3 = inlined_call_operand.hbm [shape: f32[16,32], index: 3, kind: output, shape index: {}]
  %s4 = sld [smem:[#allocation0]]
  $region45: #{tpu_custom_call.1} parent=0
    _
  %s6 = ssub.s32 1, %s4
  %s7 = scalar_select 0, %s6, %s4
  $region1: #{tpu_custom_call.1} parent=0
    #allocation2 [shape = 'u8[8192]{0}', space=vmem, size = 0x2000, scoped, tag = 'output window, operand 0']
    #allocation3 [shape = 's32[2]{0}', space=sflag, size = 0x8, scoped, tag = 'scoped memory for tpu_custom_call.1']
    %8 = vsyncpa [#allocation3], 0
    %s9 = scalar_lea.sflag [#allocation3], 1
    %10 = vsyncpa %s9, 0
    loop: start=0, step=1, limit=4
    $region2: #{tpu_custom_call.1} parent=1 // loop_pre_header
      _
    $region3: #{tpu_custom_call.1} parent=1 // loop_header
      %s12 = sphi 0, %s16
      %p13 = scmp.ge.s32.totalorder %s12, 4
      %s22 = sphi 0, %s24
      %s25 = sphi 0, %s22
      %s26 = sphi 0, %s25
      %s42 = sphi 0, %s26
      %s46 = sphi 0, %s46
      %s48 = sphi 0, %s46
      %s49 = sphi 0, %s48
      %s63 = sphi 0, %s49
      %s67 = sphi 0, %s67
      %s69 = sphi 0, %s67
      %s70 = sphi 0, %s69
      %s84 = sphi 0, %s70
      %s90 = sphi 0, %s92
      %s93 = sphi 0, %s90
      %s94 = sphi 0, %s93
      %s110 = sphi 0, %s94
    $region4: #{tpu_custom_call.1} parent=1 // loop_header_branch
      %15 = sbr.rel (%p13) target = $region8
    $region5: #{tpu_custom_call.1} parent=1 // loop_body
      %s17 = ssub.s32 %s12, 1
      %s18 = ssub.s32 %s12, 2
      %s19 = sadd.s32 %s12, 1
      %s20 = ssub.s32 %s12, %s19
      %p21 = scmp.eq.s32.totalorder %s20, 0
      %s23 = sadd.s32 %s22, 1
      %s24 = scalar_select %p21, %s22, %s23
      %p27 = pneg %p21
      %p28 = scmp.eq.s32.totalorder %s12, 1
      %p29 = por %p27, %p28
      %p30 = scmp.ne.s32.totalorder %s22, %s25
      %p31 = scmp.eq.s32.totalorder %s12, 0
      %p32 = por %p30, %p31
      %p33 = scmp.ne.s32.totalorder %s22, %s25
      %p34 = scmp.eq.s32.totalorder %s17, 1
      %p35 = por %p33, %p34
      %p36 = scmp.ne.s32.totalorder %s25, %s26
      %p37 = scmp.eq.s32.totalorder %s17, 0
      %p38 = por %p36, %p37
      %p39 = scmp.ne.s32.totalorder %s25, %s26
      %p40 = scmp.eq.s32.totalorder %s18, 1
      %p41 = por %p39, %p40
      %p43 = scmp.ne.s32.totalorder %s26, %s42
      %p44 = scmp.eq.s32.totalorder %s18, 0
      %p45 = por %p43, %p44
      %s47 = sadd.s32 %s46, 1
      %p50 = scmp.eq.s32.totalorder %s12, 1
      %p51 = scmp.ne.s32.totalorder %s46, %s48
      %p52 = scmp.eq.s32.totalorder %s12, 0
      %p53 = por %p51, %p52
      %p54 = scmp.ne.s32.totalorder %s46, %s48
      %p55 = scmp.eq.s32.totalorder %s17, 1
      %p56 = por %p54, %p55
      %p57 = scmp.ne.s32.totalorder %s48, %s49
      %p58 = scmp.eq.s32.totalorder %s17, 0
      %p59 = por %p57, %p58
      %p60 = scmp.ne.s32.totalorder %s48, %s49
      %p61 = scmp.eq.s32.totalorder %s18, 1
      %p62 = por %p60, %p61
      %p64 = scmp.ne.s32.totalorder %s49, %s63
      %p65 = scmp.eq.s32.totalorder %s18, 0
      %p66 = por %p64, %p65
      %s68 = sadd.s32 %s67, 1
      %p71 = scmp.eq.s32.totalorder %s12, 1
      %p72 = scmp.ne.s32.totalorder %s67, %s69
      %p73 = scmp.eq.s32.totalorder %s12, 0
      %p74 = por %p72, %p73
      %p75 = scmp.ne.s32.totalorder %s67, %s69
      %p76 = scmp.eq.s32.totalorder %s17, 1
      %p77 = por %p75, %p76
      %p78 = scmp.ne.s32.totalorder %s69, %s70
      %p79 = scmp.eq.s32.totalorder %s17, 0
      %p80 = por %p78, %p79
      %p81 = scmp.ne.s32.totalorder %s69, %s70
      %p82 = scmp.eq.s32.totalorder %s18, 1
      %p83 = por %p81, %p82
      %p85 = scmp.ne.s32.totalorder %s70, %s84
      %p86 = scmp.eq.s32.totalorder %s18, 0
      %p87 = por %p85, %p86
      %s88 = ssub.s32 %s12, %s19
      %p89 = scmp.eq.s32.totalorder %s88, 0
      %s91 = sadd.s32 %s90, 1
      %s92 = scalar_select %p89, %s90, %s91
      %p95 = pneg %p89
      %p96 = scmp.eq.s32.totalorder %s12, 1
      %p97 = por %p95, %p96
      %p98 = scmp.ne.s32.totalorder %s90, %s93
      %p99 = scmp.eq.s32.totalorder %s12, 0
      %p100 = por %p98, %p99
      %p101 = scmp.ne.s32.totalorder %s90, %s93
      %p102 = scmp.eq.s32.totalorder %s17, 1
      %p103 = por %p101, %p102
      %p104 = scmp.ne.s32.totalorder %s93, %s94
      %p105 = scmp.eq.s32.totalorder %s17, 0
      %p106 = por %p104, %p105
      %p107 = scmp.ne.s32.totalorder %s93, %s94
      %p108 = scmp.eq.s32.totalorder %s18, 1
      %p109 = por %p107, %p108
      %p111 = scmp.ne.s32.totalorder %s94, %s110
      %p112 = scmp.eq.s32.totalorder %s18, 0
      %p113 = por %p111, %p112
      %p114 = scmp.le.s32.totalorder 1, %s12
      %p115 = scmp.lt.s32.totalorder %s12, 3
      %p116 = pnand %p114, %p115
      %p117 = pneg %p116
      // Predicated region
      $region9: #{tpu_custom_call.1} parent=5 // pred_check
        _
      $region10: #{tpu_custom_call.1} parent=5 // pred_check_branch
        %119 = sbr.rel (%p116) target = $region12
      $region11: #{tpu_custom_call.1} parent=5 // pred_region
        %s120 = ssub.s32 %s12, 1
        // Predicated region
        $region13: #{tpu_custom_call.1} parent=11 // pred_check
          %p121 = pneg %p59
        $region14: #{tpu_custom_call.1} parent=11 // pred_check_branch
          %123 = sbr.rel (%p121) target = $region16
        $region15: #{tpu_custom_call.1} parent=11 // pred_region
          _
        $region16: #{tpu_custom_call.1} parent=11 // pred_fallthru
          _
        // Predicated region
        $region17: #{tpu_custom_call.1} parent=11 // pred_check
          %p124 = pneg %p80
        $region18: #{tpu_custom_call.1} parent=11 // pred_check_branch
          %126 = sbr.rel (%p124) target = $region20
        $region19: #{tpu_custom_call.1} parent=11 // pred_region
          _
        $region20: #{tpu_custom_call.1} parent=11 // pred_fallthru
          _
      $region12: #{tpu_custom_call.1} parent=5 // pred_fallthru
        _
      %p127 = scmp.lt.s32.totalorder %s12, 2
      // Predicated region
      $region21: #{tpu_custom_call.1} parent=5 // pred_check
        %p128 = pneg %p127
      $region22: #{tpu_custom_call.1} parent=5 // pred_check_branch
        %130 = sbr.rel (%p128) target = $region24
      $region23: #{tpu_custom_call.1} parent=5 // pred_region
        // Predicated region
        $region25: #{tpu_custom_call.1} parent=23 // pred_check
          %p131 = pneg %p32
        $region26: #{tpu_custom_call.1} parent=23 // pred_check_branch
          %133 = sbr.rel (%p131) target = $region28
        $region27: #{tpu_custom_call.1} parent=23 // pred_region
          %p134 = scmp.lt.s32.totalorder %s12, 1
          %s135 = scalar_select %p134, %s12, 1
          %s136 = smul.addr %s135, 8
          %s137 = scalar_lea.vmem %s0, %s136
        $region28: #{tpu_custom_call.1} parent=23 // pred_fallthru
          _
      $region24: #{tpu_custom_call.1} parent=5 // pred_fallthru
        _
      %p138 = scmp.le.s32.totalorder 1, %s12
      %p139 = scmp.lt.s32.totalorder %s12, 3
      %p140 = pnand %p138, %p139
      %p141 = pneg %p140
      // Predicated region
      $region29: #{tpu_custom_call.1} parent=5 // pred_check
        _
      $region30: #{tpu_custom_call.1} parent=5 // pred_check_branch
        %143 = sbr.rel (%p140) target = $region32
      $region31: #{tpu_custom_call.1} parent=5 // pred_region
        %s144 = ssub.s32 %s12, 1
        %p145 = scmp.lt.s32.totalorder %s17, 1
        %s146 = scalar_select %p145, %s17, 1
        %s147 = smul.addr %s146, 8
        %s148 = scalar_lea.vmem %s0, %s147
        %p149 = pneg %p38
        %p150 = pneg %p35
        %p151 = pneg %p59
        %p152 = pneg %p56
        %p153 = pneg %p80
        %p154 = pneg %p77
        %p155 = pneg %p106
        %p156 = pneg %p103
        %s157 = sand.u32 %s93, 1
        %s158 = scalar_lea.sflag [#allocation3], %s157
        %s159 = sand.u32 %s93, 1
        %s160 = smul.addr %s159, 8
        %s161 = scalar_lea.vmem [#allocation2], %s160
        %p162 = scmp.lt.s32.totalorder %s17, 1
        %s163 = scalar_select %p162, %s17, 1
        %s164 = smul.addr %s163, 8
        %s165 = scalar_lea.vmem %s0, %s164
        %v166 = vld [vmem:[%s165] sm:$0xff]
        %v167 = vld [vmem:[%s1] sm:$0xff]
        %v168 = vld [vmem:[%s1 + $0x8] sm:$0xff]
        %v169 = vld [vmem:[%s1 + $0x10] sm:$0xff]
        %v170 = vld [vmem:[%s1 + $0x18] sm:$0xff]
        %vm171 = vcmask 261120
        %v173 = vsel %vm171, %v166, 0
        %175 = vmatprep.subr.mxu0 0.0
        %176 = vmatpush1.msra.mxu0 0.0
        %177 = vmatprep.subr.mxu0 0.0
        %178 = vmatpush1.msra.mxu0 0.0
        %179 = vmatprep.subr.mxu0 0.0
        %180 = vmatpush1.msra.mxu0 0.0
        %181 = vmatprep.subr.mxu0 0.0
        %182 = vmatpush1.msra.mxu0 0.0
        %183 = vmatprep.subr.mxu0 0.0
        %184 = vmatpush1.msra.mxu0 0.0
        %185 = vmatprep.subr.mxu0 0.0
        %186 = vmatpush1.msra.mxu0 0.0
        %187 = vmatprep.subr.mxu0 0.0
        %188 = vmatpush1.msra.mxu0 0.0
        %189 = vmatprep.subr.mxu0 0.0
        %190 = vmatpush1.msra.mxu0 0.0
        %191 = vmatprep.subr.mxu0 0.0
        %192 = vmatpush1.msra.mxu0 0.0
        %193 = vmatprep.subr.mxu0 0.0
        %194 = vmatpush1.msra.mxu0 0.0
        %195 = vmatprep.subr.mxu0 0.0
        %196 = vmatpush1.msra.mxu0 0.0
        %197 = vmatprep.subr.mxu0 0.0
        %198 = vmatpush1.msra.mxu0 0.0
        %199 = vmatprep.subr.mxu0 0.0
        %200 = vmatpush1.msra.mxu0 %v170
        %201 = vmatprep.subr.mxu0 0.0
        %202 = vmatpush1.msra.mxu0 %v169
        %203 = vmatprep.subr.mxu0 0.0
        %204 = vmatpush1.msra.mxu0 %v168
        %205 = vmatprep.subr.mxu0 0.0
        %206 = vmatpush1.msra.mxu0 %v167
        %207 = vmatprep.subr.mxu0 0.0
        %208 = vmatpush2.msra.mxu0 0.0
        %209 = vmatprep.subr.mxu0 0.0
        %210 = vmatpush2.msra.mxu0 0.0
        %211 = vmatprep.subr.mxu0 0.0
        %212 = vmatpush2.msra.mxu0 0.0
        %213 = vmatprep.subr.mxu0 0.0
        %214 = vmatpush2.msra.mxu0 0.0
        %215 = vmatprep.subr.mxu0 0.0
        %216 = vmatpush2.msra.mxu0 0.0
        %217 = vmatprep.subr.mxu0 0.0
        %218 = vmatpush2.msra.mxu0 0.0
        %219 = vmatprep.subr.mxu0 0.0
        %220 = vmatpush2.msra.mxu0 0.0
        %221 = vmatprep.subr.mxu0 0.0
        %222 = vmatpush2.msra.mxu0 0.0
        %223 = vmatprep.subr.mxu0 0.0
        %224 = vmatpush2.msra.mxu0 0.0
        %225 = vmatprep.subr.mxu0 0.0
        %226 = vmatpush2.msra.mxu0 0.0
        %227 = vmatprep.subr.mxu0 0.0
        %228 = vmatpush2.msra.mxu0 0.0
        %229 = vmatprep.subr.mxu0 0.0
        %230 = vmatpush2.msra.mxu0 0.0
        %231 = vmatprep.subr.mxu0 0.0
        %232 = vmatpush2.msra.mxu0 0.0
        %233 = vmatprep.subr.mxu0 0.0
        %234 = vmatpush2.msra.mxu0 0.0
        %235 = vmatprep.subr.mxu0 0.0
        %236 = vmatpush2.msra.mxu0 0.0
        %237 = vmatprep.subr.mxu0 0.0
        %238 = vmatpush2.msra.mxu0 0.0
        %239 = vmatprep.mubr.f32.mxu0 0.0
        %240 = vmatmul.mubr.f32.gmra.mxu0 %v173
        %v241 = vpop.f32.mrf.mxu0
        %v242 = vadd.f32 0.0, %v241
        %v243 = vpop.f32.mrf.mxu0
        %244 = vdwg.mxu0
        %v245 = vmax.f32 %v242, 0.0
        %v246 = vld [vmem:[%s2] sm:$0xf]
        %vm247 = vcmask 31744
        %v249 = vsel %vm247, %v245, 0
        %vm251 = vcmask 1043456
        %v253 = vsel %vm251, %v246, 0
        %255 = vmatprep.subr.mxu0 0.0
        %256 = vmatpush1.msra.mxu0 0.0
        %257 = vmatprep.subr.mxu0 0.0
        %258 = vmatpush1.msra.mxu0 0.0
        %259 = vmatprep.subr.mxu0 0.0
        %260 = vmatpush1.msra.mxu0 0.0
        %261 = vmatprep.subr.mxu0 0.0
        %262 = vmatpush1.msra.mxu0 0.0
        %263 = vmatprep.subr.mxu0 0.0
        %264 = vmatpush1.msra.mxu0 0.0
        %265 = vmatprep.subr.mxu0 0.0
        %266 = vmatpush1.msra.mxu0 0.0
        %267 = vmatprep.subr.mxu0 0.0
        %268 = vmatpush1.msra.mxu0 0.0
        %269 = vmatprep.subr.mxu0 0.0
        %270 = vmatpush1.msra.mxu0 0.0
        %271 = vmatprep.subr.mxu0 0.0
        %272 = vmatpush1.msra.mxu0 0.0
        %273 = vmatprep.subr.mxu0 0.0
        %274 = vmatpush1.msra.mxu0 0.0
        %275 = vmatprep.subr.mxu0 0.0
        %276 = vmatpush1.msra.mxu0 0.0
        %277 = vmatprep.subr.mxu0 0.0
        %278 = vmatpush1.msra.mxu0 0.0
        %279 = vmatprep.subr.mxu0 0.0
        %280 = vmatpush1.msra.mxu0 0.0
        %281 = vmatprep.subr.mxu0 0.0
        %282 = vmatpush1.msra.mxu0 0.0
        %283 = vmatprep.subr.mxu0 0.0
        %284 = vmatpush1.msra.mxu0 0.0
        %285 = vmatprep.subr.mxu0 0.0
        %286 = vmatpush1.msra.mxu0 %v253
        %287 = vmatprep.subr.mxu0 0.0
        %288 = vmatpush2.msra.mxu0 0.0
        %289 = vmatprep.subr.mxu0 0.0
        %290 = vmatpush2.msra.mxu0 0.0
        %291 = vmatprep.subr.mxu0 0.0
        %292 = vmatpush2.msra.mxu0 0.0
        %293 = vmatprep.subr.mxu0 0.0
        %294 = vmatpush2.msra.mxu0 0.0
        %295 = vmatprep.subr.mxu0 0.0
        %296 = vmatpush2.msra.mxu0 0.0
        %297 = vmatprep.subr.mxu0 0.0
        %298 = vmatpush2.msra.mxu0 0.0
        %299 = vmatprep.subr.mxu0 0.0
        %300 = vmatpush2.msra.mxu0 0.0
        %301 = vmatprep.subr.mxu0 0.0
        %302 = vmatpush2.msra.mxu0 0.0
        %303 = vmatprep.subr.mxu0 0.0
        %304 = vmatpush2.msra.mxu0 0.0
        %305 = vmatprep.subr.mxu0 0.0
        %306 = vmatpush2.msra.mxu0 0.0
        %307 = vmatprep.subr.mxu0 0.0
        %308 = vmatpush2.msra.mxu0 0.0
        %309 = vmatprep.subr.mxu0 0.0
        %310 = vmatpush2.msra.mxu0 0.0
        %311 = vmatprep.subr.mxu0 0.0
        %312 = vmatpush2.msra.mxu0 0.0
        %313 = vmatprep.subr.mxu0 0.0
        %314 = vmatpush2.msra.mxu0 0.0
        %315 = vmatprep.subr.mxu0 0.0
        %316 = vmatpush2.msra.mxu0 0.0
        %317 = vmatprep.subr.mxu0 0.0
        %318 = vmatpush2.msra.mxu0 0.0
        %319 = vmatprep.mubr.f32.mxu0 0.0
        %320 = vmatmul.mubr.f32.gmra.mxu0 %v249
        %v321 = vpop.f32.mrf.mxu0
        %v322 = vadd.f32 0.0, %v321
        %v323 = vpop.f32.mrf.mxu0
        %324 = vdwg.mxu0
        %v325 = vxor.u32 %v322, 2147483648
        %v326 = vmul.f32 %v325, 1.442695
        %v327 = vpow.pop %v326
        %v328 = vadd.f32 %v327, 1.0
        %v329 = vrcp.pop %v328
        %v330 = vmul.f32 1.0, %v329
        %v331 = vmul.f32 %v166, %v330
        %332 = vst.msk [vmem:[%s161] sm:$0xff] %vm171, %v331
        %s333 = sand.u32 %s93, 1
        %s334 = scalar_lea.sflag [#allocation3], %s333
        %s335 = sand.u32 %s93, 1
        %s336 = smul.addr %s335, 8
        %s337 = scalar_lea.vmem [#allocation2], %s336
        // Predicated region
        $region33: #{tpu_custom_call.1} parent=31 // pred_check
          %p338 = pneg %p103
        $region34: #{tpu_custom_call.1} parent=31 // pred_check_branch
          %340 = sbr.rel (%p338) target = $region36
        $region35: #{tpu_custom_call.1} parent=31 // pred_region
          %s342 = ssub.s32 128, 128
          %343 = vsyncadd %s334, %s342
          %s344 = smul.addr %s17, 128
          %s345 = scalar_lea.hbm %s3, %s344
          %s347 = sshll.u32 %s337, 4
          %s348 = int_to_ptr.vmem [resolvable:$true] %s347
          %350 = dma.vmem_to_hbm [thread:$0]  %s348, 128, %s345, %s334
        $region36: #{tpu_custom_call.1} parent=31 // pred_fallthru
          _
      $region32: #{tpu_custom_call.1} parent=5 // pred_fallthru
        _
      %p351 = scmp.le.s32.totalorder 2, %s12
      // Predicated region
      $region37: #{tpu_custom_call.1} parent=5 // pred_check
        %p352 = pneg %p351
      $region38: #{tpu_custom_call.1} parent=5 // pred_check_branch
        %354 = sbr.rel (%p352) target = $region40
      $region39: #{tpu_custom_call.1} parent=5 // pred_region
        %s355 = ssub.s32 %s12, 2
        // Predicated region
        $region41: #{tpu_custom_call.1} parent=39 // pred_check
          %p356 = pneg %p109
        $region42: #{tpu_custom_call.1} parent=39 // pred_check_branch
          %358 = sbr.rel (%p356) target = $region44
        $region43: #{tpu_custom_call.1} parent=39 // pred_region
          %s359 = sand.u32 %s94, 1
          %s360 = scalar_lea.sflag [#allocation3], %s359
          %s361 = sand.u32 %s94, 1
          %s362 = smul.addr %s361, 8
          %s363 = scalar_lea.vmem [#allocation2], %s362
          %364 = dma.done %s360, 128
        $region44: #{tpu_custom_call.1} parent=39 // pred_fallthru
          _
      $region40: #{tpu_custom_call.1} parent=5 // pred_fallthru
        _
    $region6: #{tpu_custom_call.1} parent=1 // loop_footer
      %s16 = sadd.s32 1, %s12
    $region7: #{tpu_custom_call.1} parent=1 // loop_footer_branch
      %11 = sbr.rel target = $region3
    $region8: #{tpu_custom_call.1} parent=1 // loop_exit
      _
    %365 = vsyncpa [#allocation3], 1
    %s366 = scalar_lea.sflag [#allocation3], 1
    %367 = vsyncpa %s366, 1

</llo_original>
